<compile_context>
chip_gen: v6e
topology: v6e:2x2x1
jax: 0.10.0
libtpu: 0.0.40
codegen_flags: <defaults>
</compile_context>

<pallas_src>
import functools

import jax
import jax.numpy as jnp
from jax.experimental import pallas as pl
from jax.experimental.pallas import tpu as pltpu

_NUM_PARTS = 2            # leading 'parallel' grid axis (both TCs on v7x)
_TARGET_TILE_BYTES = 4 << 20   # ~4 MiB logits tile per buffer
_MAX_TN = 2048


def _round_up(x, m):
    return (x + m - 1) // m * m


def _focal_ce_partial_kernel(x_ref, t_ref, o_ref, *, n_valid, rows_per_part):
    # x_ref: (TN, C) logits tile, t_ref: (TN, 1) int32 targets tile,
    # o_ref: (8, 128) f32 resident partial-sum block for this part.
    part = pl.program_id(0)
    j = pl.program_id(1)

    @pl.when(j == 0)
    def _():
        o_ref[...] = jnp.zeros_like(o_ref)

    x = x_ref[...].astype(jnp.float32)                # (TN, C)
    t = t_ref[...]                                    # (TN, 1) int32
    tn, c = x.shape

    # Numerically stable logsumexp per row.
    m = jnp.max(x, axis=-1, keepdims=True)                              # (TN, 1)
    lse = m + jnp.log(jnp.sum(jnp.exp(x - m), axis=-1, keepdims=True))  # (TN, 1)

    # Gather logit at the target class via a where-select (one vselect,
    # no bool->f32 cast + vmul).
    class_ids = jax.lax.broadcasted_iota(jnp.int32, (tn, c), 1)         # (TN, C)
    logit_t = jnp.sum(jnp.where(class_ids == t, x, 0.0),
                      axis=-1, keepdims=True)                           # (TN, 1)

    ce = lse - logit_t                                                  # (TN, 1)

    # Mask rows that are padding beyond the true batch size.
    row0 = part * rows_per_part + j * tn
    row_ids = row0 + jax.lax.broadcasted_iota(jnp.int32, (tn, 1), 0)
    ce = jnp.where(row_ids < n_valid, ce, 0.0)

    # Accumulate the scalar partial sum (broadcast over the resident block).
    o_ref[...] += jnp.sum(ce)


def focal_loss(logits, targets, *, gamma=0.0):
    """logits: (N, C) float; targets: (N,) int class indices. Returns scalar f32."""
    n, c = logits.shape
    itemsize = jnp.dtype(logits.dtype).itemsize

    # Choose a row-tile size TN (multiple of 8) targeting ~4 MiB logits tiles.
    rows_per_part_needed = pl.cdiv(n, _NUM_PARTS)
    tn = _TARGET_TILE_BYTES // max(1, c * itemsize)
    tn = max(8, min(_MAX_TN, tn)) // 8 * 8
    tn = max(8, min(tn, _round_up(rows_per_part_needed, 8)))

    tiles_per_part = pl.cdiv(rows_per_part_needed, tn)
    rows_per_part = tiles_per_part * tn
    n_pad = _NUM_PARTS * rows_per_part

    t2d = targets.astype(jnp.int32).reshape(n, 1)
    if n_pad != n:
        logits = jnp.pad(logits, ((0, n_pad - n), (0, 0)))
        t2d = jnp.pad(t2d, ((0, n_pad - n), (0, 0)))

    kernel = functools.partial(
        _focal_ce_partial_kernel, n_valid=n, rows_per_part=rows_per_part)

    # Double-buffered logits + targets tiles plus the resident output blocks.
    est_vmem = 2 * (tn * c * itemsize + tn * 4) + 2 * 8 * 128 * 4
    compiler_params = pltpu.CompilerParams(
        dimension_semantics=("parallel", "arbitrary"),
        # Only raise the scoped VMEM limit if the working set actually needs it
        # (keeps headroom on v7x's smaller VMEM; default is fine for 4 MiB tiles).
        vmem_limit_bytes=(int(est_vmem * 2) if est_vmem > (12 << 20) else None),
    )

    cost = pl.CostEstimate(
        flops=6 * n * c,
        transcendentals=n * c,
        bytes_accessed=n_pad * c * itemsize + n_pad * 4 + _NUM_PARTS * 8 * 128 * 4,
    )

    partials = pl.pallas_call(
        kernel,
        out_shape=jax.ShapeDtypeStruct((_NUM_PARTS * 8, 128), jnp.float32),
        grid_spec=pltpu.PrefetchScalarGridSpec(
            num_scalar_prefetch=0,
            grid=(_NUM_PARTS, tiles_per_part),
            in_specs=[
                pl.BlockSpec((tn, c), lambda p, j: (p * tiles_per_part + j, 0)),
                pl.BlockSpec((tn, 1), lambda p, j: (p * tiles_per_part + j, 0)),
            ],
            out_specs=pl.BlockSpec((8, 128), lambda p, j: (p, 0)),
        ),
        compiler_params=compiler_params,
        cost_estimate=cost,
    )(logits, t2d)

    # Finalize once, in the wrapper, with the true global N.
    ce_sum = jnp.sum(partials[0::8, 0])              # one scalar per part
    logp = ce_sum / jnp.float32(n)                   # reduction='mean'
    p = jnp.exp(-logp)
    return ((1.0 - p) ** jnp.float32(gamma)) * logp


def _reference_focal_loss(logits, targets, gamma=0.0):
    # Pure-JAX reference matching the PyTorch module.
    x = logits.astype(jnp.float32)
    lse = jax.nn.logsumexp(x, axis=-1)
    logit_t = jnp.take_along_axis(
        x, targets[:, None].astype(jnp.int32), axis=-1)[:, 0]
    logp = jnp.mean(lse - logit_t)
    p = jnp.exp(-logp)
    return ((1.0 - p) ** gamma) * logp


if __name__ == "__main__":
    key = jax.random.PRNGKey(0)
    k1, k2 = jax.random.split(key)

    N, C = 8, 32
    logits = jax.random.normal(k1, (N, C), dtype=jnp.float32)
    targets = jax.random.randint(k2, (N,), 0, C, dtype=jnp.int32)

    for gamma in (0.0, 2.0):   # module default gamma=0; also check a nontrivial gamma
        loss = jax.block_until_ready(focal_loss(logits, targets, gamma=gamma))
        ref = _reference_focal_loss(logits, targets, gamma)
        assert jnp.allclose(loss, ref, atol=1e-5, rtol=1e-5), (gamma, loss, ref)

    print("KERNEL_OK")
</pallas_src>

<mosaic_0001>
module attributes {stable_mosaic.version = 11 : i64} {
  func.func @_focal_ce_partial_kernel(%arg0: i32, %arg1: i32, %arg2: memref<8x32xf32, #tpu.memory_space<vmem>>, %arg3: memref<8x1xi32, #tpu.memory_space<vmem>>, %arg4: memref<8x128xf32, #tpu.memory_space<vmem>>) attributes {dimension_semantics = [#tpu.dimension_semantics<parallel>, #tpu.dimension_semantics<arbitrary>], iteration_bounds = array<i64: 2, 1>, scalar_prefetch = 0 : i64, scratch_operands = 0 : i64, tpu.core_type = #tpu.core_type<tc>, window_params = [{transform_indices = @transform_0, window_bounds = array<i64: 8, 32>}, {transform_indices = @transform_1, window_bounds = array<i64: 8, 1>}, {transform_indices = @transform_2, window_bounds = array<i64: 8, 128>}]} {
    %c0_i32 = arith.constant 0 : i32
    %0 = arith.cmpi eq, %arg1, %c0_i32 : i32
    %1 = arith.extui %0 : i1 to i32
    %c0_i32_0 = arith.constant 0 : i32
    %2 = arith.cmpi ne, %1, %c0_i32_0 : i32
    scf.if %2 {
      %cst_15 = arith.constant 0.000000e+00 : f32
      %40 = vector.broadcast %cst_15 : f32 to vector<8x128xf32>
      %c0_16 = arith.constant 0 : index
      %c0_17 = arith.constant 0 : index
      %41 = vector.load %arg4[%c0_16, %c0_17] : memref<8x128xf32, #tpu.memory_space<vmem>>, vector<8x128xf32>
      tpu.vector_store %arg4[%c0_16, %c0_17], %40 {strides = array<i32>} : memref<8x128xf32, #tpu.memory_space<vmem>>, vector<8x128xf32>,
    } else {
    }
    %c0 = arith.constant 0 : index
    %c0_1 = arith.constant 0 : index
    %3 = vector.load %arg2[%c0, %c0_1] : memref<8x32xf32, #tpu.memory_space<vmem>>, vector<8x32xf32>
    %c0_2 = arith.constant 0 : index
    %c0_3 = arith.constant 0 : index
    %4 = vector.load %arg3[%c0_2, %c0_3] : memref<8x1xi32, #tpu.memory_space<vmem>>, vector<8x1xi32>
    %cst = arith.constant dense<0xFF800000> : vector<8xf32>
    %5 = vector.multi_reduction <maximumf>, %3, %cst [1] : vector<8x32xf32> to vector<8xf32>
    %6 = vector.shape_cast %5 : vector<8xf32> to vector<8x1xf32>
    %7 = vector.broadcast %6 : vector<8x1xf32> to vector<8x32xf32>
    %8 = arith.subf %3, %7 : vector<8x32xf32>
    %9 = math.exp %8 : vector<8x32xf32>
    %cst_4 = arith.constant dense<0.000000e+00> : vector<8xf32>
    %10 = vector.multi_reduction <add>, %9, %cst_4 [1] : vector<8x32xf32> to vector<8xf32>
    %11 = vector.shape_cast %10 : vector<8xf32> to vector<8x1xf32>
    %12 = math.log %11 : vector<8x1xf32>
    %13 = arith.addf %6, %12 : vector<8x1xf32>
    %14 = tpu.iota {dimensions = array<i32: 1>} : vector<8x32xi32>
    %15 = vector.broadcast %4 : vector<8x1xi32> to vector<8x32xi32>
    %16 = arith.cmpi eq, %14, %15 : vector<8x32xi32>
    %cst_5 = arith.constant 0.000000e+00 : f32
    %17 = vector.broadcast %cst_5 : f32 to vector<8x32xf32>
    %18 = arith.select %16, %3, %17 : vector<8x32xi1>, vector<8x32xf32>
    %cst_6 = arith.constant dense<0.000000e+00> : vector<8xf32>
    %19 = vector.multi_reduction <add>, %18, %cst_6 [1] : vector<8x32xf32> to vector<8xf32>
    %20 = vector.shape_cast %19 : vector<8xf32> to vector<8x1xf32>
    %21 = arith.subf %13, %20 : vector<8x1xf32>
    %c8_i32 = arith.constant 8 : i32
    %22 = arith.muli %arg0, %c8_i32 : i32
    %c8_i32_7 = arith.constant 8 : i32
    %23 = arith.muli %arg1, %c8_i32_7 : i32
    %24 = arith.addi %22, %23 : i32
    %25 = tpu.iota {dimensions = array<i32: 0>} : vector<8x1xi32>
    %26 = vector.broadcast %24 : i32 to vector<8x1xi32>
    %27 = arith.addi %26, %25 : vector<8x1xi32>
    %c8_i32_8 = arith.constant 8 : i32
    %28 = vector.broadcast %c8_i32_8 : i32 to vector<8x1xi32>
    %29 = arith.cmpi slt, %27, %28 : vector<8x1xi32>
    %cst_9 = arith.constant 0.000000e+00 : f32
    %30 = vector.broadcast %cst_9 : f32 to vector<8x1xf32>
    %31 = arith.select %29, %21, %30 : vector<8x1xi1>, vector<8x1xf32>
    %c0_10 = arith.constant 0 : index
    %c0_11 = arith.constant 0 : index
    %32 = vector.load %arg4[%c0_10, %c0_11] : memref<8x128xf32, #tpu.memory_space<vmem>>, vector<8x128xf32>
    %33 = vector.shape_cast %31 : vector<8x1xf32> to vector<1x8x1xf32>
    %cst_12 = arith.constant dense<0.000000e+00> : vector<1xf32>
    %34 = vector.multi_reduction <add>, %33, %cst_12 [1, 2] : vector<1x8x1xf32> to vector<1xf32>
    %35 = vector.shape_cast %34 : vector<1xf32> to vector<1x1x1xf32>
    %36 = vector.extract %35[0, 0, 0] : f32 from vector<1x1x1xf32>
    %37 = vector.broadcast %36 : f32 to vector<8x128xf32>
    %38 = arith.addf %32, %37 : vector<8x128xf32>
    %c0_13 = arith.constant 0 : index
    %c0_14 = arith.constant 0 : index
    %39 = vector.load %arg4[%c0_13, %c0_14] : memref<8x128xf32, #tpu.memory_space<vmem>>, vector<8x128xf32>
    tpu.vector_store %arg4[%c0_13, %c0_14], %38 {strides = array<i32>} : memref<8x128xf32, #tpu.memory_space<vmem>>, vector<8x128xf32>,
    return
  }
  func.func @transform_0(%arg0: i32, %arg1: i32) -> (i32, i32) {
    %c1_i32 = arith.constant 1 : i32
    %0 = arith.muli %arg0, %c1_i32 : i32
    %1 = arith.addi %0, %arg1 : i32
    %c0_i32 = arith.constant 0 : i32
    %c0_i32_0 = arith.constant 0 : i32
    return %1, %c0_i32 : i32, i32
  }
  func.func @transform_1(%arg0: i32, %arg1: i32) -> (i32, i32) {
    %c1_i32 = arith.constant 1 : i32
    %0 = arith.muli %arg0, %c1_i32 : i32
    %1 = arith.addi %0, %arg1 : i32
    %c0_i32 = arith.constant 0 : i32
    %c0_i32_0 = arith.constant 0 : i32
    return %1, %c0_i32 : i32, i32
  }
  func.func @transform_2(%arg0: i32, %arg1: i32) -> (i32, i32) {
    %c0_i32 = arith.constant 0 : i32
    %c0_i32_0 = arith.constant 0 : i32
    return %arg0, %c0_i32 : i32, i32
  }
}

</mosaic_0001>

<llo_original>
// kernel: tpu_custom_call.1
$region0: #{tpu_custom_call.1}
  #allocation0 [shape = 'u32[]', space=smem, size = 0x4, offset = 0x4, fixed_abs, tag = 'smem constant byte address 0x4 - core index']
  #allocation1 [shape = 'u32[144,128]{1,0:T(1,128)}', space=vmem, size = 0x12000, scoped, tag = 'internal scratch']
  %s0 = inlined_call_operand.vmem [shape: f32[16,32], index: 0, kind: input, shape index: {}]
  %s1 = inlined_call_operand.vmem [shape: s32[16,1], index: 1, kind: input, shape index: {}]
  %s2 = inlined_call_operand.hbm [shape: f32[16,128], index: 2, kind: output, shape index: {}]
  %s3 = sld [smem:[#allocation0]]
  $region45: #{tpu_custom_call.1} parent=0
    _
  %s5 = ssub.s32 1, %s3
  %s6 = scalar_select 0, %s5, %s3
  $region1: #{tpu_custom_call.1} parent=0
    #allocation2 [shape = 'u8[8192]{0}', space=vmem, size = 0x2000, scoped, tag = 'output window, operand 0']
    #allocation3 [shape = 's32[2]{0}', space=sflag, size = 0x8, scoped, tag = 'scoped memory for tpu_custom_call.1']
    %7 = vsyncpa [#allocation3], 0
    %s8 = scalar_lea.sflag [#allocation3], 1
    %9 = vsyncpa %s8, 0
    loop: start=0, step=1, limit=4
    $region2: #{tpu_custom_call.1} parent=1 // loop_pre_header
      _
    $region3: #{tpu_custom_call.1} parent=1 // loop_header
      %s11 = sphi 0, %s15
      %p12 = scmp.ge.s32.totalorder %s11, 4
      %s18 = sphi 0, %s30
      %s19 = sphi 0, %s26
      %s20 = sphi 0, %s18
      %s21 = sphi 0, %s19
      %s22 = sphi 0, %s20
      %s23 = sphi 0, %s21
      %s35 = sphi 0, %s37
      %s38 = sphi 0, %s35
      %s39 = sphi 0, %s38
      %s55 = sphi 0, %s39
      %s63 = sphi 0, %s65
      %s66 = sphi 0, %s63
      %s67 = sphi 0, %s66
      %s83 = sphi 0, %s67
      %s89 = sphi 0, %s91
      %s92 = sphi 0, %s89
      %s93 = sphi 0, %s92
      %s109 = sphi 0, %s93
    $region4: #{tpu_custom_call.1} parent=1 // loop_header_branch
      %14 = sbr.rel (%p12) target = $region8
    $region5: #{tpu_custom_call.1} parent=1 // loop_body
      %s16 = ssub.s32 %s11, 1
      %s17 = ssub.s32 %s11, 2
      %s24 = sadd.s32 1, %s19
      %p25 = scmp.ge.s32.totalorder %s24, 1
      %s26 = scalar_select %p25, 0, %s24
      %s27 = sadd.s32 1, %s18
      %s28 = scalar_select %p25, %s27, %s18
      %p29 = scmp.ge.s32.totalorder %s28, 2
      %s30 = scalar_select %p29, 0, %s28
      %s31 = sadd.s32 %s18, %s19
      %s32 = sadd.s32 %s30, %s26
      %s33 = ssub.s32 %s31, %s32
      %p34 = scmp.eq.s32.totalorder %s33, 0
      %s36 = sadd.s32 %s35, 1
      %s37 = scalar_select %p34, %s35, %s36
      %p40 = pneg %p34
      %p41 = scmp.eq.s32.totalorder %s11, 1
      %p42 = por %p40, %p41
      %p43 = scmp.ne.s32.totalorder %s35, %s38
      %p44 = scmp.eq.s32.totalorder %s11, 0
      %p45 = por %p43, %p44
      %p46 = scmp.ne.s32.totalorder %s35, %s38
      %p47 = scmp.eq.s32.totalorder %s16, 1
      %p48 = por %p46, %p47
      %p49 = scmp.ne.s32.totalorder %s38, %s39
      %p50 = scmp.eq.s32.totalorder %s16, 0
      %p51 = por %p49, %p50
      %p52 = scmp.ne.s32.totalorder %s38, %s39
      %p53 = scmp.eq.s32.totalorder %s17, 1
      %p54 = por %p52, %p53
      %p56 = scmp.ne.s32.totalorder %s39, %s55
      %p57 = scmp.eq.s32.totalorder %s17, 0
      %p58 = por %p56, %p57
      %s59 = sadd.s32 %s18, %s19
      %s60 = sadd.s32 %s30, %s26
      %s61 = ssub.s32 %s59, %s60
      %p62 = scmp.eq.s32.totalorder %s61, 0
      %s64 = sadd.s32 %s63, 1
      %s65 = scalar_select %p62, %s63, %s64
      %p68 = pneg %p62
      %p69 = scmp.eq.s32.totalorder %s11, 1
      %p70 = por %p68, %p69
      %p71 = scmp.ne.s32.totalorder %s63, %s66
      %p72 = scmp.eq.s32.totalorder %s11, 0
      %p73 = por %p71, %p72
      %p74 = scmp.ne.s32.totalorder %s63, %s66
      %p75 = scmp.eq.s32.totalorder %s16, 1
      %p76 = por %p74, %p75
      %p77 = scmp.ne.s32.totalorder %s66, %s67
      %p78 = scmp.eq.s32.totalorder %s16, 0
      %p79 = por %p77, %p78
      %p80 = scmp.ne.s32.totalorder %s66, %s67
      %p81 = scmp.eq.s32.totalorder %s17, 1
      %p82 = por %p80, %p81
      %p84 = scmp.ne.s32.totalorder %s67, %s83
      %p85 = scmp.eq.s32.totalorder %s17, 0
      %p86 = por %p84, %p85
      %s87 = ssub.s32 %s18, %s30
      %p88 = scmp.eq.s32.totalorder %s87, 0
      %s90 = sadd.s32 %s89, 1
      %s91 = scalar_select %p88, %s89, %s90
      %p94 = pneg %p88
      %p95 = scmp.eq.s32.totalorder %s11, 1
      %p96 = por %p94, %p95
      %p97 = scmp.ne.s32.totalorder %s89, %s92
      %p98 = scmp.eq.s32.totalorder %s11, 0
      %p99 = por %p97, %p98
      %p100 = scmp.ne.s32.totalorder %s89, %s92
      %p101 = scmp.eq.s32.totalorder %s16, 1
      %p102 = por %p100, %p101
      %p103 = scmp.ne.s32.totalorder %s92, %s93
      %p104 = scmp.eq.s32.totalorder %s16, 0
      %p105 = por %p103, %p104
      %p106 = scmp.ne.s32.totalorder %s92, %s93
      %p107 = scmp.eq.s32.totalorder %s17, 1
      %p108 = por %p106, %p107
      %p110 = scmp.ne.s32.totalorder %s93, %s109
      %p111 = scmp.eq.s32.totalorder %s17, 0
      %p112 = por %p110, %p111
      %p113 = scmp.le.s32.totalorder 1, %s11
      %p114 = scmp.lt.s32.totalorder %s11, 3
      %p115 = pnand %p113, %p114
      %p116 = pneg %p115
      // Predicated region
      $region9: #{tpu_custom_call.1} parent=5 // pred_check
        _
      $region10: #{tpu_custom_call.1} parent=5 // pred_check_branch
        %118 = sbr.rel (%p115) target = $region12
      $region11: #{tpu_custom_call.1} parent=5 // pred_region
        %s119 = ssub.s32 %s11, 1
      $region12: #{tpu_custom_call.1} parent=5 // pred_fallthru
        _
      %p120 = scmp.lt.s32.totalorder %s11, 2
      // Predicated region
      $region13: #{tpu_custom_call.1} parent=5 // pred_check
        %p121 = pneg %p120
      $region14: #{tpu_custom_call.1} parent=5 // pred_check_branch
        %123 = sbr.rel (%p121) target = $region16
      $region15: #{tpu_custom_call.1} parent=5 // pred_region
        // Predicated region
        $region17: #{tpu_custom_call.1} parent=15 // pred_check
          %p124 = pneg %p45
        $region18: #{tpu_custom_call.1} parent=15 // pred_check_branch
          %126 = sbr.rel (%p124) target = $region20
        $region19: #{tpu_custom_call.1} parent=15 // pred_region
          %s127 = sadd.s32 %s18, %s19
          %p128 = scmp.lt.s32.totalorder %s127, 1
          %s129 = scalar_select %p128, %s127, 1
          %s130 = smul.addr %s129, 8
          %s131 = scalar_lea.vmem %s0, %s130
          %s132 = sadd.s32 %s18, %s19
        $region20: #{tpu_custom_call.1} parent=15 // pred_fallthru
          _
        // Predicated region
        $region21: #{tpu_custom_call.1} parent=15 // pred_check
          %p133 = pneg %p73
        $region22: #{tpu_custom_call.1} parent=15 // pred_check_branch
          %135 = sbr.rel (%p133) target = $region24
        $region23: #{tpu_custom_call.1} parent=15 // pred_region
          %s136 = sadd.s32 %s18, %s19
          %p137 = scmp.lt.s32.totalorder %s136, 1
          %s138 = scalar_select %p137, %s136, 1
          %s139 = smul.addr %s138, 8
          %s140 = scalar_lea.vmem %s1, %s139
          %s141 = sadd.s32 %s18, %s19
        $region24: #{tpu_custom_call.1} parent=15 // pred_fallthru
          _
      $region16: #{tpu_custom_call.1} parent=5 // pred_fallthru
        _
      %p142 = scmp.le.s32.totalorder 1, %s11
      %p143 = scmp.lt.s32.totalorder %s11, 3
      %p144 = pnand %p142, %p143
      %p145 = pneg %p144
      // Predicated region
      $region25: #{tpu_custom_call.1} parent=5 // pred_check
        _
      $region26: #{tpu_custom_call.1} parent=5 // pred_check_branch
        %147 = sbr.rel (%p144) target = $region28
      $region27: #{tpu_custom_call.1} parent=5 // pred_region
        %s148 = ssub.s32 %s11, 1
        %s149 = sadd.s32 %s20, %s21
        %p150 = scmp.lt.s32.totalorder %s149, 1
        %s151 = scalar_select %p150, %s149, 1
        %s152 = smul.addr %s151, 8
        %s153 = scalar_lea.vmem %s0, %s152
        %p154 = pneg %p51
        %p155 = pneg %p48
        %s156 = sadd.s32 %s20, %s21
        %p157 = scmp.lt.s32.totalorder %s156, 1
        %s158 = scalar_select %p157, %s156, 1
        %s159 = smul.addr %s158, 8
        %s160 = scalar_lea.vmem %s1, %s159
        %p161 = pneg %p79
        %p162 = pneg %p76
        %p163 = pneg %p105
        %p164 = pneg %p102
        %s165 = sand.u32 %s92, 1
        %s166 = scalar_lea.sflag [#allocation3], %s165
        %s167 = sand.u32 %s92, 1
        %s168 = smul.addr %s167, 8
        %s169 = scalar_lea.vmem [#allocation2], %s168
        %s170 = sadd.s32 %s20, %s21
        %p171 = scmp.lt.s32.totalorder %s170, 1
        %s172 = scalar_select %p171, %s170, 1
        %s173 = smul.addr %s172, 8
        %s174 = scalar_lea.vmem %s0, %s173
        %s175 = sadd.s32 %s20, %s21
        %s176 = sadd.s32 %s20, %s21
        %p177 = scmp.lt.s32.totalorder %s176, 1
        %s178 = scalar_select %p177, %s176, 1
        %s179 = smul.addr %s178, 8
        %s180 = scalar_lea.vmem %s1, %s179
        %s181 = sadd.s32 %s20, %s21
        %p182 = scmp.eq.s32.totalorder %s21, 0
        // Predicated region
        $region29: #{tpu_custom_call.1} parent=27 // pred_check
          %p183 = pneg %p182
        $region30: #{tpu_custom_call.1} parent=27 // pred_check_branch
          %185 = sbr.rel (%p183) target = $region32
        $region31: #{tpu_custom_call.1} parent=27 // pred_region
          %186 = vst [vmem:[%s169] sm:$0xff] 0.0
        $region32: #{tpu_custom_call.1} parent=27 // pred_fallthru
          _
        %v187 = vld [vmem:[%s174] sm:$0xff]
        %v188 = vld [vmem:[%s180] sm:$0xff]
        %vm189 = vcmask 261120
        %v190 = vsel %vm189, %v187, -inf
        %191 = vmax.xlane.f32.xlu0 %v190
        %v192 = vpop.xlane.xlu0 %191
        %v193 = vsub.f32 %v187, %v192
        %v194 = vmul.f32 %v193, 1.442695
        %v195 = vpow.pop %v194
        %v196 = vsel %vm189, %v195, 0.0
        %197 = vadd.xlane.f32.xlu0 %v196
        %v198 = vpop.xlane.xlu0 %197
        %v199 = vlog2.pop %v198
        %v200 = vmul.f32 %v199, 0.6931472
        %v201 = vadd.f32 %v192, %v200
        %v202 = vlaneseq
        %v203 = vand.u32 %v202, 127
        %204 = vset.pattern.permute.xlu0 0
        %205 = vperm.xlu0 %204, %v188
        %v206 = vpop.permute.xlu0 %205
        %vm207 = vcmp.eq.s32.totalorder %v203, %v206
        %v208 = vsel %vm207, %v187, 0.0
        %v209 = vsel %vm189, %v208, 0.0
        %210 = vadd.xlane.f32.xlu0 %v209
        %v211 = vpop.xlane.xlu0 %210
        %v212 = vsub.f32 %v201, %v211
        %s213 = smul.u32 %s20, 8
        %s214 = smul.u32 %s21, 8
        %s215 = sadd.s32 %s213, %s214
        %v216 = vlaneseq
        %v217 = vshrl.u32 %v216, 7
        %v218 = vstv %s215
        %v219 = vadd.s32 %v218, %v217
        %vm220 = vcmp.lt.s32.totalorder %v219, 8
        %v221 = vsel %vm220, %v212, 0.0
        %v222 = vld [vmem:[%s169] sm:$0xff]
        %vm223 = vcmask 7168
        %v224 = vsel %vm223, %v221, 0.0
        %225 = vadd.xlane.f32.xlu0 %v224
        %v226 = vpop.xlane.xlu0 %225
        %v227 = vrot.slane %v226, 4
        %v228 = vadd.f32 %v226, %v227
        %v229 = vrot.slane %v228, 2
        %v230 = vadd.f32 %v228, %v229
        %v231 = vrot.slane %v230, 1
        %v232 = vadd.f32 %v230, %v231
        %s233 = vtos %v232
        %v234 = vstv %s233
        %v235 = vadd.f32 %v222, %v234
        %236 = vst [vmem:[%s169] sm:$0xff] %v235
        %s237 = sand.u32 %s92, 1
        %s238 = scalar_lea.sflag [#allocation3], %s237
        %s239 = sand.u32 %s92, 1
        %s240 = smul.addr %s239, 8
        %s241 = scalar_lea.vmem [#allocation2], %s240
        // Predicated region
        $region33: #{tpu_custom_call.1} parent=27 // pred_check
          %p242 = pneg %p102
        $region34: #{tpu_custom_call.1} parent=27 // pred_check_branch
          %244 = sbr.rel (%p242) target = $region36
        $region35: #{tpu_custom_call.1} parent=27 // pred_region
          %s246 = ssub.s32 128, 128
          %247 = vsyncadd %s238, %s246
          %s248 = smul.addr %s20, 128
          %s249 = scalar_lea.hbm %s2, %s248
          %s251 = sshll.u32 %s241, 4
          %s252 = int_to_ptr.vmem [resolvable:$true] %s251
          %254 = dma.vmem_to_hbm [thread:$0]  %s252, 128, %s249, %s238
        $region36: #{tpu_custom_call.1} parent=27 // pred_fallthru
          _
      $region28: #{tpu_custom_call.1} parent=5 // pred_fallthru
        _
      %p255 = scmp.le.s32.totalorder 2, %s11
      // Predicated region
      $region37: #{tpu_custom_call.1} parent=5 // pred_check
        %p256 = pneg %p255
      $region38: #{tpu_custom_call.1} parent=5 // pred_check_branch
        %258 = sbr.rel (%p256) target = $region40
      $region39: #{tpu_custom_call.1} parent=5 // pred_region
        %s259 = ssub.s32 %s11, 2
        // Predicated region
        $region41: #{tpu_custom_call.1} parent=39 // pred_check
          %p260 = pneg %p108
        $region42: #{tpu_custom_call.1} parent=39 // pred_check_branch
          %262 = sbr.rel (%p260) target = $region44
        $region43: #{tpu_custom_call.1} parent=39 // pred_region
          %s263 = sand.u32 %s93, 1
          %s264 = scalar_lea.sflag [#allocation3], %s263
          %s265 = sand.u32 %s93, 1
          %s266 = smul.addr %s265, 8
          %s267 = scalar_lea.vmem [#allocation2], %s266
          %268 = dma.done %s264, 128
        $region44: #{tpu_custom_call.1} parent=39 // pred_fallthru
          _
      $region40: #{tpu_custom_call.1} parent=5 // pred_fallthru
        _
    $region6: #{tpu_custom_call.1} parent=1 // loop_footer
      %s15 = sadd.s32 1, %s11
    $region7: #{tpu_custom_call.1} parent=1 // loop_footer_branch
      %10 = sbr.rel target = $region3
    $region8: #{tpu_custom_call.1} parent=1 // loop_exit
      _
    %269 = vsyncpa [#allocation3], 1
    %s270 = scalar_lea.sflag [#allocation3], 1
    %271 = vsyncpa %s270, 1

</llo_original>
